<compile_context>
chip_gen: v7x
topology: tpu7x:2x2x1
jax: 0.10.0
libtpu: 0.0.40
codegen_flags: <defaults>
</compile_context>

<pallas_src>
import functools

import jax
import jax.numpy as jnp
from jax import lax
from jax.experimental import pallas as pl
from jax.experimental.pallas import tpu as pltpu


def _block1_kernel(a_ref, b_ref, o_ref, *, m_half, m_quarter, half_cols):
    """Whole-batch conv + BN + ReLU + 2x2 max-pool in one grid step.

    a_ref : (M, Rpad)                 M = N*Ho rows ordered (ho%2, hp%2, n, hp//2);
                                      last column group holds the ones (bias) column.
    b_ref : (Rpad, Wo*Cout)           Toeplitz conv weights * BN scale; row R = BN bias.
                                      Columns ordered (wo%2, wo//2, cout).
    o_ref : (N*Hpool//2, 2*Wpool*Cout)  lane-dense pooled output (two pooled rows per row).
    """
    # Single MXU matmul for the whole batch (f32 accumulation).
    y = jnp.dot(a_ref[...], b_ref[...], preferred_element_type=jnp.float32)
    # BN scale/bias already folded into B / the ones-column of A -> only ReLU here.
    y = jnp.maximum(y, 0.0)
    # MaxPool2d((2,2), stride=(2,2)): both steps are maxima of contiguous halves.
    yh = jnp.maximum(y[:m_half, :], y[m_half:, :])            # H-pool (row slabs)
    yw = jnp.maximum(yh[:, :half_cols], yh[:, half_cols:])    # W-pool (lane halves)
    # Pack two pooled rows per output row -> last dim = 2*Wpool*Cout (multiple of 128)
    # for unmasked vector stores.
    o_ref[...] = jnp.concatenate(
        [yw[:m_quarter, :], yw[m_quarter:, :]], axis=-1).astype(o_ref.dtype)


def _toeplitz_weights_folded(w_hwio, Wp, Wo, stride, scale, bias, r_pad):
    """B[(kh*Wp + w_in)*Cin + cin, (wo%2)*Wpool*Cout + (wo//2)*Cout + cout]
         = W[kh, w_in - wo*stride, cin, cout] * scale[cout]
       plus a bias row at index K*Wp*Cin (paired with the ones column of A).

    # TODO(synk): at real sizes replace this Wp-wide Toeplitz band (multiplies
    # structural zeros, ~0.5 GB at 448^2/k=7) with per-tap or classic im2col weights.
    """
    K, _, Cin, Cout = w_hwio.shape
    Wpool = Wo // 2
    w = w_hwio.astype(jnp.float32) * scale[None, None, None, :]    # fold BN scale
    b = jnp.zeros((K, Wp, Cin, 2, Wpool, Cout), jnp.float32)
    for kw in range(K):
        for wo in range(Wo):
            b = b.at[:, wo * stride + kw, :, wo % 2, wo // 2, :].set(w[:, kw, :, :])
    b = b.reshape(K * Wp * Cin, Wo * Cout)
    r = K * Wp * Cin
    b_full = jnp.zeros((r_pad, Wo * Cout), jnp.float32)
    b_full = b_full.at[:r, :].set(b)
    b_full = b_full.at[r, :].set(jnp.tile(bias, Wo))               # fold BN bias
    return b_full


def yolov1_block1(x_nchw, w_hwio, bn_gamma, bn_beta, bn_mean, bn_var,
                  *, kernel_size, stride, padding, eps=1e-5,
                  mxu_dtype=jnp.bfloat16):
    """Forward pass of Yolov1_block1 on TPU via Pallas.

    x_nchw : (N, Cin, H, W) float32 (PyTorch layout)
    w_hwio : (K, K, Cin, Cout) float32
    returns: (N, Cout, Hconv//2, Wconv//2) float32 (PyTorch layout)
    """
    # TODO(synk): stride > 1 (real YOLOv1 first block, k=7 s=2) needs strided slabs
    # and a strided Toeplitz band; this config uses stride == 1.
    assert stride == 1, "this config uses stride=1"
    N, Cin, H, W = x_nchw.shape
    K = kernel_size
    Cout = w_hwio.shape[-1]

    Ho = (H + 2 * padding - K) // stride + 1
    Wo = (W + 2 * padding - K) // stride + 1
    # TODO(synk): odd Ho/Wo (PyTorch floor-crop) needs a crop before the parity packing.
    assert Ho % 4 == 0 and Wo % 2 == 0, (Ho, Wo)
    Hp, Wp = H + 2 * padding, W + 2 * padding
    Hpool, Wpool = Ho // 2, Wo // 2
    R = K * Wp * Cin                       # raw contraction depth
    Rpad = ((R + 1 + 127) // 128) * 128    # +1 bias column, padded to 128 lanes
    Ncol = Wo * Cout                       # conv-matmul output width (lane-dense)
    M = N * Ho                             # batch folded into matmul M
    half_cols = Wpool * Cout

    # Fold BatchNorm2d (eval) into per-channel scale/bias.
    scale = (bn_gamma / jnp.sqrt(bn_var + eps)).astype(jnp.float32)
    bias = (bn_beta - bn_mean * scale).astype(jnp.float32)

    # --- wrapper-side layout plumbing -------------------------------------
    # TODO(synk): at real sizes fold the transpose/pad/slab construction into the
    # kernel's strip DMA instead of materializing extra HBM copies here.
    x = jnp.transpose(x_nchw, (0, 2, 3, 1)).astype(jnp.float32)        # NCHW -> NHWC
    x = jnp.pad(x, ((0, 0), (padding, padding), (padding, padding), (0, 0)))
    x = x.reshape(N, Hp, Wp * Cin)
    # im2col over kh only (the W window is folded into the Toeplitz weights).
    a = jnp.concatenate([x[:, kh:kh + Ho, :] for kh in range(K)], axis=-1)  # (N,Ho,R)
    # Row order (ho%2, hp%2, n, hp//2) with ho = 4*hh + 2*q + hpar, so the H-pool and
    # the two-pooled-rows-per-output-row packing are contiguous sublane slabs.
    a = a.reshape(N, Hpool // 2, 2, 2, R).transpose(3, 2, 0, 1, 4).reshape(M, R)
    a = jnp.pad(a, ((0, 0), (0, Rpad - R)))
    a = a.at[:, R].set(1.0)                       # ones column -> bias row of B
    a = a.astype(mxu_dtype)

    b = _toeplitz_weights_folded(w_hwio, Wp, Wo, stride, scale, bias,
                                 Rpad).astype(mxu_dtype)

    kernel = functools.partial(_block1_kernel,
                               m_half=N * Hpool,
                               m_quarter=N * Hpool // 2,
                               half_cols=half_cols)

    out = pl.pallas_call(
        kernel,
        out_shape=jax.ShapeDtypeStruct((N * Hpool // 2, 2 * half_cols), jnp.float32),
        grid_spec=pltpu.PrefetchScalarGridSpec(
            num_scalar_prefetch=0,
            # Single step: per-step overhead (~0.35us) dwarfs this matmul, so the whole
            # batch is one call.  TODO(synk): M-tiled "parallel" H-strip grid at real
            # sizes (feeds v7x's two TensorCores, M >= 128/256 per step).
            grid=(1,),
            in_specs=[
                pl.BlockSpec((M, Rpad), lambda i: (0, 0)),
                pl.BlockSpec((Rpad, Ncol), lambda i: (0, 0)),
            ],
            out_specs=pl.BlockSpec((N * Hpool // 2, 2 * half_cols),
                                   lambda i: (0, 0)),
        ),
        compiler_params=pltpu.CompilerParams(
            dimension_semantics=("arbitrary",)),
    )(a, b)

    # Lane-dense kernel output -> PyTorch NCHW:
    # rows = (n, hp//2); cols = (hp%2, wp, cout).
    out = out.reshape(N, Hpool // 2, 2, Wpool, Cout).reshape(N, Hpool, Wpool, Cout)
    return jnp.transpose(out, (0, 3, 1, 2))


def _reference(x_nchw, w_hwio, bn_gamma, bn_beta, bn_mean, bn_var,
               *, kernel_size, stride, padding, eps=1e-5):
    """Pure-JAX reference (same semantics as the PyTorch module, eval-mode BN)."""
    x = jnp.transpose(x_nchw, (0, 2, 3, 1)).astype(jnp.float32)
    y = lax.conv_general_dilated(
        x, w_hwio.astype(jnp.float32),
        window_strides=(stride, stride),
        padding=[(padding, padding), (padding, padding)],
        dimension_numbers=("NHWC", "HWIO", "NHWC"))
    scale = bn_gamma / jnp.sqrt(bn_var + eps)
    y = y * scale + (bn_beta - bn_mean * scale)
    y = jnp.maximum(y, 0.0)
    y = lax.reduce_window(y, -jnp.inf, lax.max,
                          window_dimensions=(1, 2, 2, 1),
                          window_strides=(1, 2, 2, 1),
                          padding="VALID")
    return jnp.transpose(y, (0, 3, 1, 2))


if __name__ == "__main__":
    # Small synthetic config: Conv(4 -> 8, k=3, stride=1, pad=1) + BN + ReLU + MaxPool2x2.
    N, Cin, H, W = 2, 4, 16, 16
    Cout, K, STRIDE, PAD = 8, 3, 1, 1

    key = jax.random.PRNGKey(0)
    kx, kw, kg, kb, km, kv = jax.random.split(key, 6)

    x = jax.random.normal(kx, (N, Cin, H, W), jnp.float32)
    w_hwio = jax.random.normal(kw, (K, K, Cin, Cout), jnp.float32) * 0.1
    bn_gamma = 1.0 + 0.1 * jax.random.normal(kg, (Cout,), jnp.float32)
    bn_beta = 0.1 * jax.random.normal(kb, (Cout,), jnp.float32)
    bn_mean = 0.1 * jax.random.normal(km, (Cout,), jnp.float32)
    bn_var = jax.random.uniform(kv, (Cout,), jnp.float32, 0.5, 1.5)

    ref = jax.block_until_ready(
        _reference(x, w_hwio, bn_gamma, bn_beta, bn_mean, bn_var,
                   kernel_size=K, stride=STRIDE, padding=PAD))

    # Exactness check with f32 MXU operands (tight tolerance).
    out_f32 = jax.block_until_ready(
        yolov1_block1(x, w_hwio, bn_gamma, bn_beta, bn_mean, bn_var,
                      kernel_size=K, stride=STRIDE, padding=PAD,
                      mxu_dtype=jnp.float32))
    assert out_f32.shape == (N, Cout, H // 2, W // 2), out_f32.shape
    assert jnp.allclose(out_f32, ref, atol=1e-4, rtol=1e-4), float(
        jnp.max(jnp.abs(out_f32 - ref)))

    # Performance path: bf16 MXU operands, f32 accumulation (native MXU dtype on
    # v5e/v6e/v7x) -- looser tolerance vs the f32 reference.
    out_bf16 = jax.block_until_ready(
        yolov1_block1(x, w_hwio, bn_gamma, bn_beta, bn_mean, bn_var,
                      kernel_size=K, stride=STRIDE, padding=PAD,
                      mxu_dtype=jnp.bfloat16))
    assert out_bf16.shape == (N, Cout, H // 2, W // 2), out_bf16.shape
    assert jnp.allclose(out_bf16, ref, atol=5e-2, rtol=5e-2), float(
        jnp.max(jnp.abs(out_bf16 - ref)))

    print("KERNEL_OK")
</pallas_src>

<mosaic_0001>
module attributes {stable_mosaic.version = 11 : i64} {
  func.func @_block1_kernel(%arg0: i32, %arg1: memref<32x256xf32, #tpu.memory_space<vmem>>, %arg2: memref<256x128xf32, #tpu.memory_space<vmem>>, %arg3: memref<8x128xf32, #tpu.memory_space<vmem>>) attributes {dimension_semantics = [#tpu.dimension_semantics<arbitrary>], iteration_bounds = array<i64: 1>, scalar_prefetch = 0 : i64, scratch_operands = 0 : i64, tpu.core_type = #tpu.core_type<tc>, window_params = [{pipeline_mode = #tpu.pipeline_mode<synchronous>, transform_indices = @transform_0, window_bounds = array<i64: 32, 256>}, {pipeline_mode = #tpu.pipeline_mode<synchronous>, transform_indices = @transform_1, window_bounds = array<i64: 256, 128>}, {pipeline_mode = #tpu.pipeline_mode<synchronous>, transform_indices = @transform_2, window_bounds = array<i64: 8, 128>}]} {
    %c0 = arith.constant 0 : index
    %c0_0 = arith.constant 0 : index
    %0 = vector.load %arg1[%c0, %c0_0] : memref<32x256xf32, #tpu.memory_space<vmem>>, vector<32x256xf32>
    %c0_1 = arith.constant 0 : index
    %c0_2 = arith.constant 0 : index
    %1 = vector.load %arg2[%c0_1, %c0_2] : memref<256x128xf32, #tpu.memory_space<vmem>>, vector<256x128xf32>
    %cst = arith.constant dense<0.000000e+00> : vector<32x128xf32>
    %2 = tpu.matmul %0, %1, %cst {dimension_numbers = #tpu.dot_dimension_numbers<[1], [0], [0], [1], [0, 0, 1, 1], [], []>} : vector<32x256xf32>, vector<256x128xf32>, vector<32x128xf32> -> vector<32x128xf32>
    %cst_3 = arith.constant 0.000000e+00 : f32
    %3 = vector.broadcast %cst_3 : f32 to vector<32x128xf32>
    %4 = arith.maximumf %2, %3 : vector<32x128xf32>
    %5 = vector.extract_strided_slice %4 {offsets = [0, 0], sizes = [16, 128], strides = [1, 1]} : vector<32x128xf32> to vector<16x128xf32>
    %6 = vector.extract_strided_slice %4 {offsets = [16, 0], sizes = [16, 128], strides = [1, 1]} : vector<32x128xf32> to vector<16x128xf32>
    %7 = arith.maximumf %5, %6 : vector<16x128xf32>
    %8 = vector.extract_strided_slice %7 {offsets = [0, 0], sizes = [16, 64], strides = [1, 1]} : vector<16x128xf32> to vector<16x64xf32>
    %9 = vector.extract_strided_slice %7 {offsets = [0, 64], sizes = [16, 64], strides = [1, 1]} : vector<16x128xf32> to vector<16x64xf32>
    %10 = arith.maximumf %8, %9 : vector<16x64xf32>
    %11 = vector.extract_strided_slice %10 {offsets = [0, 0], sizes = [8, 64], strides = [1, 1]} : vector<16x64xf32> to vector<8x64xf32>
    %12 = vector.extract_strided_slice %10 {offsets = [8, 0], sizes = [8, 64], strides = [1, 1]} : vector<16x64xf32> to vector<8x64xf32>
    %13 = tpu.concatenate %11, %12 in 1 : vector<8x64xf32>, vector<8x64xf32> -> vector<8x128xf32>
    %c0_4 = arith.constant 0 : index
    %c0_5 = arith.constant 0 : index
    %14 = vector.load %arg3[%c0_4, %c0_5] : memref<8x128xf32, #tpu.memory_space<vmem>>, vector<8x128xf32>
    tpu.vector_store %arg3[%c0_4, %c0_5], %13 {strides = array<i32>} : memref<8x128xf32, #tpu.memory_space<vmem>>, vector<8x128xf32>,
    return
  }
  func.func @transform_0(%arg0: i32) -> (i32, i32) {
    %c0_i32 = arith.constant 0 : i32
    %c0_i32_0 = arith.constant 0 : i32
    %c0_i32_1 = arith.constant 0 : i32
    return %c0_i32, %c0_i32_0 : i32, i32
  }
  func.func @transform_1(%arg0: i32) -> (i32, i32) {
    %c0_i32 = arith.constant 0 : i32
    %c0_i32_0 = arith.constant 0 : i32
    %c0_i32_1 = arith.constant 0 : i32
    return %c0_i32, %c0_i32_0 : i32, i32
  }
  func.func @transform_2(%arg0: i32) -> (i32, i32) {
    %c0_i32 = arith.constant 0 : i32
    %c0_i32_0 = arith.constant 0 : i32
    %c0_i32_1 = arith.constant 0 : i32
    return %c0_i32, %c0_i32_0 : i32, i32
  }
}

</mosaic_0001>

<llo_original>
// kernel: tpu_custom_call.1
$region0: #{tpu_custom_call.1}
  #allocation0 [shape = 'u32[]', space=smem, size = 0x4, offset = 0x4, fixed_abs, tag = 'smem constant byte address 0x4 - core index']
  #allocation1 [shape = 'u32[144,128]{1,0:T(1,128)}', space=vmem, size = 0x12000, scoped, tag = 'internal scratch']
  %s0 = inlined_call_operand.hbm [shape: f32[32,256], index: 0, kind: input, shape index: {}]
  %s1 = inlined_call_operand.hbm [shape: f32[256,128], index: 1, kind: input, shape index: {}]
  %s2 = inlined_call_operand.hbm [shape: f32[8,128], index: 2, kind: output, shape index: {}]
  %s3 = sld [smem:[#allocation0]]
  $region26: #{tpu_custom_call.1} parent=0
    _
  %s5 = ssub.s32 1, %s3
  %s6 = scalar_select 0, %s5, %s3
  $region1: #{tpu_custom_call.1} parent=0
    #allocation2 [shape = 'u8[32768]{0}', space=vmem, size = 0x8000, scoped, tag = 'input window, operand 0, single buffered']
    #allocation3 [shape = 's32[1]{0}', space=sflag, size = 0x4, scoped, tag = 'scoped memory for tpu_custom_call.1']
    #allocation4 [shape = 's32[1]{0}', space=sflag, size = 0x4, scoped, tag = 'scoped memory for tpu_custom_call.1']
    #allocation5 [shape = 'u8[131072]{0}', space=vmem, size = 0x20000, scoped, tag = 'input window, operand 1, single buffered']
    #allocation6 [shape = 's32[1]{0}', space=sflag, size = 0x4, scoped, tag = 'scoped memory for tpu_custom_call.1']
    #allocation7 [shape = 'u8[4096]{0}', space=vmem, size = 0x1000, scoped, tag = 'output window, operand 0, single buffered']
    %7 = vsyncpa [#allocation3], 0
    %8 = vsyncpa [#allocation6], 0
    %9 = vsyncpa [#allocation4], 0
    // Predicated region
    $region2: #{tpu_custom_call.1} parent=1 // pred_check
      _
    $region3: #{tpu_custom_call.1} parent=1 // pred_check_branch
      %11 = sbr.rel (0) target = $region5
    $region4: #{tpu_custom_call.1} parent=1 // pred_region
      %s13 = ssub.s32 1024, 1024
      %14 = vsyncadd [#allocation3], %s13
      %s15 = sshll.u32 [#allocation2], 4
      %s16 = int_to_ptr.vmem [resolvable:$true] %s15
      %21 = dma.hbm_to_vmem [thread:$0]  %s0, 1024, %s16, [#allocation3], 256, 256, 16
    $region5: #{tpu_custom_call.1} parent=1 // pred_fallthru
      _
    // Predicated region
    $region6: #{tpu_custom_call.1} parent=1 // pred_check
      _
    $region7: #{tpu_custom_call.1} parent=1 // pred_check_branch
      %23 = sbr.rel (0) target = $region9
    $region8: #{tpu_custom_call.1} parent=1 // pred_region
      %s25 = ssub.s32 4096, 4096
      %26 = vsyncadd [#allocation6], %s25
      %s27 = sshll.u32 [#allocation5], 4
      %s28 = int_to_ptr.vmem [resolvable:$true] %s27
      %33 = dma.hbm_to_vmem [thread:$0]  %s1, 4096, %s28, [#allocation6], 128, 128, 8
    $region9: #{tpu_custom_call.1} parent=1 // pred_fallthru
      _
    // Predicated region
    $region10: #{tpu_custom_call.1} parent=1 // pred_check
      _
    $region11: #{tpu_custom_call.1} parent=1 // pred_check_branch
      %35 = sbr.rel (0) target = $region13
    $region12: #{tpu_custom_call.1} parent=1 // pred_region
      %36 = dma.done [#allocation3], 1024
    $region13: #{tpu_custom_call.1} parent=1 // pred_fallthru
      _
    // Predicated region
    $region14: #{tpu_custom_call.1} parent=1 // pred_check
      _
    $region15: #{tpu_custom_call.1} parent=1 // pred_check_branch
      %38 = sbr.rel (0) target = $region17
    $region16: #{tpu_custom_call.1} parent=1 // pred_region
      %39 = dma.done [#allocation6], 4096
    $region17: #{tpu_custom_call.1} parent=1 // pred_fallthru
      _
    %v40 = vld [vmem:[#allocation2] sm:$0xff]
    %v41 = vld [vmem:[#allocation2 + $0x8] sm:$0xff]
    %v42 = vld [vmem:[#allocation2 + $0x10] sm:$0xff]
    %v43 = vld [vmem:[#allocation2 + $0x18] sm:$0xff]
    %v44 = vld [vmem:[#allocation2 + $0x20] sm:$0xff]
    %v45 = vld [vmem:[#allocation2 + $0x28] sm:$0xff]
    %v46 = vld [vmem:[#allocation2 + $0x30] sm:$0xff]
    %v47 = vld [vmem:[#allocation2 + $0x38] sm:$0xff]
    %v48 = vld [vmem:[#allocation5] sm:$0xff]
    %v49 = vld [vmem:[#allocation5 + $0x8] sm:$0xff]
    %v50 = vld [vmem:[#allocation5 + $0x10] sm:$0xff]
    %v51 = vld [vmem:[#allocation5 + $0x18] sm:$0xff]
    %v52 = vld [vmem:[#allocation5 + $0x20] sm:$0xff]
    %v53 = vld [vmem:[#allocation5 + $0x28] sm:$0xff]
    %v54 = vld [vmem:[#allocation5 + $0x30] sm:$0xff]
    %v55 = vld [vmem:[#allocation5 + $0x38] sm:$0xff]
    %v56 = vld [vmem:[#allocation5 + $0x40] sm:$0xff]
    %v57 = vld [vmem:[#allocation5 + $0x48] sm:$0xff]
    %v58 = vld [vmem:[#allocation5 + $0x50] sm:$0xff]
    %v59 = vld [vmem:[#allocation5 + $0x58] sm:$0xff]
    %v60 = vld [vmem:[#allocation5 + $0x60] sm:$0xff]
    %v61 = vld [vmem:[#allocation5 + $0x68] sm:$0xff]
    %v62 = vld [vmem:[#allocation5 + $0x70] sm:$0xff]
    %v63 = vld [vmem:[#allocation5 + $0x78] sm:$0xff]
    %v64 = vld [vmem:[#allocation5 + $0x80] sm:$0xff]
    %v65 = vld [vmem:[#allocation5 + $0x88] sm:$0xff]
    %v66 = vld [vmem:[#allocation5 + $0x90] sm:$0xff]
    %v67 = vld [vmem:[#allocation5 + $0x98] sm:$0xff]
    %v68 = vld [vmem:[#allocation5 + $0xa0] sm:$0xff]
    %v69 = vld [vmem:[#allocation5 + $0xa8] sm:$0xff]
    %v70 = vld [vmem:[#allocation5 + $0xb0] sm:$0xff]
    %v71 = vld [vmem:[#allocation5 + $0xb8] sm:$0xff]
    %v72 = vld [vmem:[#allocation5 + $0xc0] sm:$0xff]
    %v73 = vld [vmem:[#allocation5 + $0xc8] sm:$0xff]
    %v74 = vld [vmem:[#allocation5 + $0xd0] sm:$0xff]
    %v75 = vld [vmem:[#allocation5 + $0xd8] sm:$0xff]
    %v76 = vld [vmem:[#allocation5 + $0xe0] sm:$0xff]
    %v77 = vld [vmem:[#allocation5 + $0xe8] sm:$0xff]
    %v78 = vld [vmem:[#allocation5 + $0xf0] sm:$0xff]
    %v79 = vld [vmem:[#allocation5 + $0xf8] sm:$0xff]
    %80 = vmatprep.subr.mxu0 0.0
    %81 = vmatpush1.msra.mxu0 %v48
    %82 = vmatprep.subr.mxu0 0.0
    %83 = vmatpush1.msra.mxu0 %v49
    %84 = vmatprep.subr.mxu0 0.0
    %85 = vmatpush1.msra.mxu0 %v50
    %86 = vmatprep.subr.mxu0 0.0
    %87 = vmatpush1.msra.mxu0 %v51
    %88 = vmatprep.subr.mxu0 0.0
    %89 = vmatpush1.msra.mxu0 %v52
    %90 = vmatprep.subr.mxu0 0.0
    %91 = vmatpush1.msra.mxu0 %v53
    %92 = vmatprep.subr.mxu0 0.0
    %93 = vmatpush1.msra.mxu0 %v54
    %94 = vmatprep.subr.mxu0 0.0
    %95 = vmatpush1.msra.mxu0 %v55
    %96 = vmatprep.subr.mxu0 0.0
    %97 = vmatpush1.msra.mxu0 %v56
    %98 = vmatprep.subr.mxu0 0.0
    %99 = vmatpush1.msra.mxu0 %v57
    %100 = vmatprep.subr.mxu0 0.0
    %101 = vmatpush1.msra.mxu0 %v58
    %102 = vmatprep.subr.mxu0 0.0
    %103 = vmatpush1.msra.mxu0 %v59
    %104 = vmatprep.subr.mxu0 0.0
    %105 = vmatpush1.msra.mxu0 %v60
    %106 = vmatprep.subr.mxu0 0.0
    %107 = vmatpush1.msra.mxu0 %v61
    %108 = vmatprep.subr.mxu0 0.0
    %109 = vmatpush1.msra.mxu0 %v62
    %110 = vmatprep.subr.mxu0 0.0
    %111 = vmatpush1.msra.mxu0 %v63
    %112 = vmatprep.subr.mxu0 0.0
    %113 = vmatpush1.msra.mxu0 %v64
    %114 = vmatprep.subr.mxu0 0.0
    %115 = vmatpush1.msra.mxu0 %v65
    %116 = vmatprep.subr.mxu0 0.0
    %117 = vmatpush1.msra.mxu0 %v66
    %118 = vmatprep.subr.mxu0 0.0
    %119 = vmatpush1.msra.mxu0 %v67
    %120 = vmatprep.subr.mxu0 0.0
    %121 = vmatpush1.msra.mxu0 %v68
    %122 = vmatprep.subr.mxu0 0.0
    %123 = vmatpush1.msra.mxu0 %v69
    %124 = vmatprep.subr.mxu0 0.0
    %125 = vmatpush1.msra.mxu0 %v70
    %126 = vmatprep.subr.mxu0 0.0
    %127 = vmatpush1.msra.mxu0 %v71
    %128 = vmatprep.subr.mxu0 0.0
    %129 = vmatpush1.msra.mxu0 %v72
    %130 = vmatprep.subr.mxu0 0.0
    %131 = vmatpush1.msra.mxu0 %v73
    %132 = vmatprep.subr.mxu0 0.0
    %133 = vmatpush1.msra.mxu0 %v74
    %134 = vmatprep.subr.mxu0 0.0
    %135 = vmatpush1.msra.mxu0 %v75
    %136 = vmatprep.subr.mxu0 0.0
    %137 = vmatpush1.msra.mxu0 %v76
    %138 = vmatprep.subr.mxu0 0.0
    %139 = vmatpush1.msra.mxu0 %v77
    %140 = vmatprep.subr.mxu0 0.0
    %141 = vmatpush1.msra.mxu0 %v78
    %142 = vmatprep.subr.mxu0 0.0
    %143 = vmatpush1.msra.mxu0 %v79
    %144 = vmatprep.mubr.f32.mxu0 %v41
    %145 = vmatmul.mubr.f32.gmra.mrb[0].mxu0 %v40
    %v146 = vpop.f32.mrb[0].mxu0
    %v147 = vadd.f32 0.0, %v146
    %v148 = vpop.f32.mrb[0].mxu0
    %149 = vmatprep.mubr.f32.mxu0 %v43
    %150 = vmatmul.mubr.f32.gmra.mrb[0].mxu0 %v42
    %v151 = vpop.f32.mrb[0].mxu0
    %v152 = vadd.f32 0.0, %v151
    %v153 = vpop.f32.mrb[0].mxu0
    %154 = vmatprep.mubr.f32.mxu0 %v45
    %155 = vmatmul.mubr.f32.gmra.mrb[0].mxu0 %v44
    %v156 = vpop.f32.mrb[0].mxu0
    %v157 = vadd.f32 0.0, %v156
    %v158 = vpop.f32.mrb[0].mxu0
    %159 = vmatprep.mubr.f32.mxu0 %v47
    %160 = vmatmul.mubr.f32.gmra.mrb[0].mxu0 %v46
    %v161 = vpop.f32.mrb[0].mxu0
    %v162 = vadd.f32 0.0, %v161
    %v163 = vpop.f32.mrb[0].mxu0
    %164 = vdwg.mxu0
    %v165 = vmax.f32 %v147, 0.0
    %v166 = vmax.f32 %v152, 0.0
    %v167 = vmax.f32 %v157, 0.0
    %v168 = vmax.f32 %v162, 0.0
    %v169 = vmax.f32 %v165, %v167
    %v170 = vmax.f32 %v166, %v168
    %173 = vrot.lane.b32.xlu0 %v169, 64
    %v174 = vpop.permute.xlu0 %173
    %175 = vrot.lane.b32.xlu0 %v170, 64
    %v176 = vpop.permute.xlu0 %175
    %v179 = vmax.f32 %v169, %v174
    %v180 = vmax.f32 %v170, %v176
    %182 = vrot.lane.b32.xlu0 %v180, 64
    %v183 = vpop.permute.xlu0 %182
    %vm185 = vcmask 523264
    %v186 = vsel %vm185, %v179, %v183
    %187 = vst [vmem:[#allocation7] sm:$0xff] %v186
    // Predicated region
    $region18: #{tpu_custom_call.1} parent=1 // pred_check
      _
    $region19: #{tpu_custom_call.1} parent=1 // pred_check_branch
      %189 = sbr.rel (0) target = $region21
    $region20: #{tpu_custom_call.1} parent=1 // pred_region
      %s191 = ssub.s32 128, 128
      %192 = vsyncadd [#allocation4], %s191
      %s194 = sshll.u32 [#allocation7], 4
      %s195 = int_to_ptr.vmem [resolvable:$true] %s194
      %197 = dma.vmem_to_hbm [thread:$0]  %s195, 128, %s2, [#allocation4]
    $region21: #{tpu_custom_call.1} parent=1 // pred_fallthru
      _
    // Predicated region
    $region22: #{tpu_custom_call.1} parent=1 // pred_check
      _
    $region23: #{tpu_custom_call.1} parent=1 // pred_check_branch
      %199 = sbr.rel (0) target = $region25
    $region24: #{tpu_custom_call.1} parent=1 // pred_region
      %200 = dma.done [#allocation4], 128
    $region25: #{tpu_custom_call.1} parent=1 // pred_fallthru
      _
    %201 = vsyncpa [#allocation3], 1
    %202 = vsyncpa [#allocation6], 1
    %203 = vsyncpa [#allocation4], 1

</llo_original>
